<compile_context>
chip_gen: v7x
topology: tpu7x:2x2x1
jax: 0.10.0
libtpu: 0.0.40
codegen_flags: <defaults>
</compile_context>

<pallas_src>
import functools

import jax
import jax.numpy as jnp
from jax.experimental import pallas as pl
from jax.experimental.pallas import tpu as pltpu

HIDDEN_WIDTH = 20   # config['Hidden_layer_width']
HIDDEN_DEPTH = 2    # config['Hidden_layer_depth']
HIDDEN_PAD = 32     # hidden dims zero-padded to 32 (bf16 sublane-friendly)


def _round_up(n, m):
    return ((n + m - 1) // m) * m


# ----------------------------------------------------------------------------
# Kernel
# ----------------------------------------------------------------------------
def mlp_kernel(x_ref,
               w0_ref, b0_ref,
               w1_ref, b1_ref,
               w2_ref, b2_ref,
               w3_ref, b3_ref,
               o_ref):
    """Fused MLP forward: 4 Linear layers with ReLU between all but the last.

    x is read as f32 and cast to bf16 in-kernel (no separate XLA cast pass).
    Matmuls are bf16 x bf16 -> f32 on the MXU; bias add + ReLU stay in f32 on
    the VPU (v5e has no bf16 VPU). Final store is narrow (tile, n_out) f32.
    """
    x = x_ref[...].astype(jnp.bfloat16)  # (tile, n_in)

    h = jnp.dot(x, w0_ref[...], preferred_element_type=jnp.float32) + b0_ref[...]
    h = jnp.maximum(h, 0.0).astype(jnp.bfloat16)

    h = jnp.dot(h, w1_ref[...], preferred_element_type=jnp.float32) + b1_ref[...]
    h = jnp.maximum(h, 0.0).astype(jnp.bfloat16)

    h = jnp.dot(h, w2_ref[...], preferred_element_type=jnp.float32) + b2_ref[...]
    h = jnp.maximum(h, 0.0).astype(jnp.bfloat16)

    out = jnp.dot(h, w3_ref[...], preferred_element_type=jnp.float32) + b3_ref[...]
    o_ref[...] = out.astype(o_ref.dtype)  # (tile, n_out) -- narrow, no padding


# ----------------------------------------------------------------------------
# Param preparation (done ONCE, outside the jitted call path)
# ----------------------------------------------------------------------------
def prepare_params(params):
    """Zero-pad hidden dims to 32 and cast weights to bf16.

    params: list of (W, b) with W (fan_in, fan_out) f32, b (1, fan_out) f32.
    Returns (w0, b0, w1, b1, w2, b2, w3, b3) with:
      * layer 0: W (n_in, 32), hidden out-dim zero-padded,
      * hidden layers: W (32, 32),
      * last layer: W (32, n_out) -- output dim left NARROW (no lane padding),
      * weights bf16, biases f32 (added post-accumulation).
    Zero padding is mathematically transparent: padded weight rows/cols and
    bias entries are zero, and ReLU(0) = 0.
    """
    n_layers = len(params)
    flat = []
    for li, (w, b) in enumerate(params):
        fan_in, fan_out = w.shape
        in_pad = fan_in if li == 0 else _round_up(fan_in, HIDDEN_PAD)
        out_pad = fan_out if li == n_layers - 1 else _round_up(fan_out, HIDDEN_PAD)
        wp = jnp.zeros((in_pad, out_pad), jnp.float32).at[:fan_in, :fan_out].set(w)
        bp = jnp.zeros((1, out_pad), jnp.float32).at[:, :fan_out].set(b)
        flat.append(wp.astype(jnp.bfloat16))
        flat.append(bp)
    return tuple(flat)


# ----------------------------------------------------------------------------
# pallas_call wrapper
# ----------------------------------------------------------------------------
@functools.partial(jax.jit, static_argnames=("batch_tile",))
def _mlp_forward_prepared(x, flat_params, batch_tile):
    B, n_in = x.shape
    n_out = flat_params[-1].shape[1]  # narrow output width

    grid = (pl.cdiv(B, batch_tile),)

    # x / out stream over the batch; weights & biases are whole-array blocks
    # with constant block indices -> VMEM-resident across all grid steps.
    in_specs = [pl.BlockSpec((batch_tile, n_in), lambda i: (i, 0))]
    for p in flat_params:
        in_specs.append(pl.BlockSpec(p.shape, lambda i: (0, 0)))
    # Narrow output block: last dim equals the full array dim, so it is legal
    # even though n_out < 128. Total write traffic is n_out*4 B/row.
    out_specs = pl.BlockSpec((batch_tile, n_out), lambda i: (i, 0))

    # Advisory cost estimate reflecting the true streams (f32 input in-kernel
    # cast, narrow f32 output, small resident weights).
    flops = 2 * B * sum(int(w.shape[0]) * int(w.shape[1]) for w in flat_params[0::2])
    bytes_accessed = (
        B * n_in * 4                                    # f32 input stream
        + B * n_out * 4                                 # f32 narrow output stream
        + sum(int(p.size) * p.dtype.itemsize for p in flat_params)
    )
    cost = pl.CostEstimate(flops=flops, transcendentals=0,
                           bytes_accessed=bytes_accessed)

    return pl.pallas_call(
        mlp_kernel,
        out_shape=jax.ShapeDtypeStruct((B, n_out), jnp.float32),
        grid_spec=pltpu.PrefetchScalarGridSpec(
            num_scalar_prefetch=0,
            grid=grid,
            in_specs=in_specs,
            out_specs=out_specs,
        ),
        compiler_params=pltpu.CompilerParams(
            dimension_semantics=("parallel",),
        ),
        cost_estimate=cost,
    )(x, *flat_params)


def _is_two_tensorcore_chip():
    """True on chips with 2 TensorCores sharing a grid (v7x-class)."""
    try:
        kind = jax.devices()[0].device_kind.lower()
        return "v7" in kind
    except Exception:  # pragma: no cover - conservative fallback
        return False


def mlp_forward(x, flat_params, batch_tile=4096):
    """x: (B, n_in) f32. flat_params: output of prepare_params. Returns (B, n_out) f32."""
    B = x.shape[0]
    tile = min(int(batch_tile), _round_up(B, 8))
    # Only split the batch into >= 2 grid steps on 2-TC chips (v7x), where the
    # "parallel" axis shards across cores. Single-TC v5e/v6e keep one big tile
    # (no parallelism to gain, and extra steps just add per-step overhead).
    if _is_two_tensorcore_chip() and B >= 16:
        tile = min(tile, _round_up((B + 1) // 2, 8))
    tile = max(8, tile)
    return _mlp_forward_prepared(x, flat_params, tile)


# ----------------------------------------------------------------------------
# Init + references
# ----------------------------------------------------------------------------
def init_params(key, number_inputs, number_outputs,
                hidden_width=HIDDEN_WIDTH, hidden_depth=HIDDEN_DEPTH):
    """Deterministic init matching torch.nn.Linear's U(-1/sqrt(fan_in), 1/sqrt(fan_in))."""
    dims = [number_inputs] + [hidden_width] * (hidden_depth + 1) + [number_outputs]
    params = []
    for fan_in, fan_out in zip(dims[:-1], dims[1:]):
        key, kw, kb = jax.random.split(key, 3)
        bound = 1.0 / jnp.sqrt(jnp.float32(fan_in))
        w = jax.random.uniform(kw, (fan_in, fan_out), jnp.float32, -bound, bound)
        b = jax.random.uniform(kb, (1, fan_out), jnp.float32, -bound, bound)
        params.append((w, b))
    return params


def mlp_reference_f32(x, params):
    """Plain-JAX f32 reference (mirrors the PyTorch forward)."""
    h = x
    for i, (w, b) in enumerate(params):
        h = h @ w + b
        if i < len(params) - 1:
            h = jnp.maximum(h, 0.0)
    return h


def mlp_reference_bf16(x, params):
    """Reference applying the same bf16 rounding the kernel applies (tight check)."""
    h = x.astype(jnp.bfloat16)
    for i, (w, b) in enumerate(params):
        h = jnp.dot(h, w.astype(jnp.bfloat16),
                    preferred_element_type=jnp.float32) + b
        if i < len(params) - 1:
            h = jnp.maximum(h, 0.0).astype(jnp.bfloat16)
    return h


# ----------------------------------------------------------------------------
# Test
# ----------------------------------------------------------------------------
if __name__ == "__main__":
    number_inputs = 16
    number_outputs = 4
    batch = 256

    key = jax.random.PRNGKey(0)
    key, kx = jax.random.split(key)
    x = jax.random.normal(kx, (batch, number_inputs), dtype=jnp.float32)

    params = init_params(key, number_inputs, number_outputs)
    flat_padded = prepare_params(params)   # pad + cast ONCE, outside the jitted wrapper

    out = mlp_forward(x, flat_padded, batch_tile=128)
    out = jax.block_until_ready(out)

    ref_bf16 = mlp_reference_bf16(x, params)   # same rounding as the kernel
    ref_f32 = mlp_reference_f32(x, params)     # sanity vs full-precision math

    assert out.shape == (batch, number_outputs)
    assert jnp.allclose(out, ref_bf16, atol=2e-3, rtol=2e-3), \
        "Pallas output mismatch vs bf16-mirrored reference"
    assert jnp.allclose(out, ref_f32, atol=5e-2, rtol=5e-2), \
        "Pallas output mismatch vs f32 reference"

    print("KERNEL_OK")
</pallas_src>

<mosaic_0001>
module attributes {stable_mosaic.version = 11 : i64} {
  func.func @mlp_kernel(%arg0: i32, %arg1: memref<128x16xf32, #tpu.memory_space<vmem>>, %arg2: memref<16x32xbf16, #tpu.memory_space<vmem>>, %arg3: memref<1x32xf32, #tpu.memory_space<vmem>>, %arg4: memref<32x32xbf16, #tpu.memory_space<vmem>>, %arg5: memref<1x32xf32, #tpu.memory_space<vmem>>, %arg6: memref<32x32xbf16, #tpu.memory_space<vmem>>, %arg7: memref<1x32xf32, #tpu.memory_space<vmem>>, %arg8: memref<32x4xbf16, #tpu.memory_space<vmem>>, %arg9: memref<1x4xf32, #tpu.memory_space<vmem>>, %arg10: memref<128x4xf32, #tpu.memory_space<vmem>>) attributes {dimension_semantics = [#tpu.dimension_semantics<parallel>], iteration_bounds = array<i64: 2>, scalar_prefetch = 0 : i64, scratch_operands = 0 : i64, tpu.core_type = #tpu.core_type<tc>, window_params = [{transform_indices = @transform_0, window_bounds = array<i64: 128, 16>}, {pipeline_mode = #tpu.pipeline_mode<synchronous>, transform_indices = @transform_1, window_bounds = array<i64: 16, 32>}, {pipeline_mode = #tpu.pipeline_mode<synchronous>, transform_indices = @transform_2, window_bounds = array<i64: 1, 32>}, {pipeline_mode = #tpu.pipeline_mode<synchronous>, transform_indices = @transform_3, window_bounds = array<i64: 32, 32>}, {pipeline_mode = #tpu.pipeline_mode<synchronous>, transform_indices = @transform_4, window_bounds = array<i64: 1, 32>}, {pipeline_mode = #tpu.pipeline_mode<synchronous>, transform_indices = @transform_5, window_bounds = array<i64: 32, 32>}, {pipeline_mode = #tpu.pipeline_mode<synchronous>, transform_indices = @transform_6, window_bounds = array<i64: 1, 32>}, {pipeline_mode = #tpu.pipeline_mode<synchronous>, transform_indices = @transform_7, window_bounds = array<i64: 32, 4>}, {pipeline_mode = #tpu.pipeline_mode<synchronous>, transform_indices = @transform_8, window_bounds = array<i64: 1, 4>}, {transform_indices = @transform_9, window_bounds = array<i64: 128, 4>}]} {
    %c0 = arith.constant 0 : index
    %c0_0 = arith.constant 0 : index
    %0 = vector.load %arg1[%c0, %c0_0] : memref<128x16xf32, #tpu.memory_space<vmem>>, vector<128x16xf32>
    %1 = arith.truncf %0 : vector<128x16xf32> to vector<128x16xbf16>
    %c0_1 = arith.constant 0 : index
    %c0_2 = arith.constant 0 : index
    %2 = vector.load %arg2[%c0_1, %c0_2] : memref<16x32xbf16, #tpu.memory_space<vmem>>, vector<16x32xbf16>
    %cst = arith.constant dense<0.000000e+00> : vector<128x32xf32>
    %3 = tpu.matmul %1, %2, %cst {dimension_numbers = #tpu.dot_dimension_numbers<[1], [0], [0], [1], [0, 0, 1, 1], [], []>} : vector<128x16xbf16>, vector<16x32xbf16>, vector<128x32xf32> -> vector<128x32xf32>
    %c0_3 = arith.constant 0 : index
    %c0_4 = arith.constant 0 : index
    %4 = vector.load %arg3[%c0_3, %c0_4] : memref<1x32xf32, #tpu.memory_space<vmem>>, vector<1x32xf32>
    %5 = vector.broadcast %4 : vector<1x32xf32> to vector<128x32xf32>
    %6 = arith.addf %3, %5 : vector<128x32xf32>
    %cst_5 = arith.constant 0.000000e+00 : f32
    %7 = vector.broadcast %cst_5 : f32 to vector<128x32xf32>
    %8 = arith.maximumf %6, %7 : vector<128x32xf32>
    %9 = arith.truncf %8 : vector<128x32xf32> to vector<128x32xbf16>
    %c0_6 = arith.constant 0 : index
    %c0_7 = arith.constant 0 : index
    %10 = vector.load %arg4[%c0_6, %c0_7] : memref<32x32xbf16, #tpu.memory_space<vmem>>, vector<32x32xbf16>
    %cst_8 = arith.constant dense<0.000000e+00> : vector<128x32xf32>
    %11 = tpu.matmul %9, %10, %cst_8 {dimension_numbers = #tpu.dot_dimension_numbers<[1], [0], [0], [1], [0, 0, 1, 1], [], []>} : vector<128x32xbf16>, vector<32x32xbf16>, vector<128x32xf32> -> vector<128x32xf32>
    %c0_9 = arith.constant 0 : index
    %c0_10 = arith.constant 0 : index
    %12 = vector.load %arg5[%c0_9, %c0_10] : memref<1x32xf32, #tpu.memory_space<vmem>>, vector<1x32xf32>
    %13 = vector.broadcast %12 : vector<1x32xf32> to vector<128x32xf32>
    %14 = arith.addf %11, %13 : vector<128x32xf32>
    %cst_11 = arith.constant 0.000000e+00 : f32
    %15 = vector.broadcast %cst_11 : f32 to vector<128x32xf32>
    %16 = arith.maximumf %14, %15 : vector<128x32xf32>
    %17 = arith.truncf %16 : vector<128x32xf32> to vector<128x32xbf16>
    %c0_12 = arith.constant 0 : index
    %c0_13 = arith.constant 0 : index
    %18 = vector.load %arg6[%c0_12, %c0_13] : memref<32x32xbf16, #tpu.memory_space<vmem>>, vector<32x32xbf16>
    %cst_14 = arith.constant dense<0.000000e+00> : vector<128x32xf32>
    %19 = tpu.matmul %17, %18, %cst_14 {dimension_numbers = #tpu.dot_dimension_numbers<[1], [0], [0], [1], [0, 0, 1, 1], [], []>} : vector<128x32xbf16>, vector<32x32xbf16>, vector<128x32xf32> -> vector<128x32xf32>
    %c0_15 = arith.constant 0 : index
    %c0_16 = arith.constant 0 : index
    %20 = vector.load %arg7[%c0_15, %c0_16] : memref<1x32xf32, #tpu.memory_space<vmem>>, vector<1x32xf32>
    %21 = vector.broadcast %20 : vector<1x32xf32> to vector<128x32xf32>
    %22 = arith.addf %19, %21 : vector<128x32xf32>
    %cst_17 = arith.constant 0.000000e+00 : f32
    %23 = vector.broadcast %cst_17 : f32 to vector<128x32xf32>
    %24 = arith.maximumf %22, %23 : vector<128x32xf32>
    %25 = arith.truncf %24 : vector<128x32xf32> to vector<128x32xbf16>
    %c0_18 = arith.constant 0 : index
    %c0_19 = arith.constant 0 : index
    %26 = vector.load %arg8[%c0_18, %c0_19] : memref<32x4xbf16, #tpu.memory_space<vmem>>, vector<32x4xbf16>
    %cst_20 = arith.constant dense<0.000000e+00> : vector<128x4xf32>
    %27 = tpu.matmul %25, %26, %cst_20 {dimension_numbers = #tpu.dot_dimension_numbers<[1], [0], [0], [1], [0, 0, 1, 1], [], []>} : vector<128x32xbf16>, vector<32x4xbf16>, vector<128x4xf32> -> vector<128x4xf32>
    %c0_21 = arith.constant 0 : index
    %c0_22 = arith.constant 0 : index
    %28 = vector.load %arg9[%c0_21, %c0_22] : memref<1x4xf32, #tpu.memory_space<vmem>>, vector<1x4xf32>
    %29 = vector.broadcast %28 : vector<1x4xf32> to vector<128x4xf32>
    %30 = arith.addf %27, %29 : vector<128x4xf32>
    %c0_23 = arith.constant 0 : index
    %c0_24 = arith.constant 0 : index
    %31 = vector.load %arg10[%c0_23, %c0_24] : memref<128x4xf32, #tpu.memory_space<vmem>>, vector<128x4xf32>
    tpu.vector_store %arg10[%c0_23, %c0_24], %30 {strides = array<i32>} : memref<128x4xf32, #tpu.memory_space<vmem>>, vector<128x4xf32>,
    return
  }
  func.func @transform_0(%arg0: i32) -> (i32, i32) {
    %c0_i32 = arith.constant 0 : i32
    %c0_i32_0 = arith.constant 0 : i32
    return %arg0, %c0_i32 : i32, i32
  }
  func.func @transform_1(%arg0: i32) -> (i32, i32) {
    %c0_i32 = arith.constant 0 : i32
    %c0_i32_0 = arith.constant 0 : i32
    %c0_i32_1 = arith.constant 0 : i32
    return %c0_i32, %c0_i32_0 : i32, i32
  }
  func.func @transform_2(%arg0: i32) -> (i32, i32) {
    %c0_i32 = arith.constant 0 : i32
    %c0_i32_0 = arith.constant 0 : i32
    %c0_i32_1 = arith.constant 0 : i32
    return %c0_i32, %c0_i32_0 : i32, i32
  }
  func.func @transform_3(%arg0: i32) -> (i32, i32) {
    %c0_i32 = arith.constant 0 : i32
    %c0_i32_0 = arith.constant 0 : i32
    %c0_i32_1 = arith.constant 0 : i32
    return %c0_i32, %c0_i32_0 : i32, i32
  }
  func.func @transform_4(%arg0: i32) -> (i32, i32) {
    %c0_i32 = arith.constant 0 : i32
    %c0_i32_0 = arith.constant 0 : i32
    %c0_i32_1 = arith.constant 0 : i32
    return %c0_i32, %c0_i32_0 : i32, i32
  }
  func.func @transform_5(%arg0: i32) -> (i32, i32) {
    %c0_i32 = arith.constant 0 : i32
    %c0_i32_0 = arith.constant 0 : i32
    %c0_i32_1 = arith.constant 0 : i32
    return %c0_i32, %c0_i32_0 : i32, i32
  }
  func.func @transform_6(%arg0: i32) -> (i32, i32) {
    %c0_i32 = arith.constant 0 : i32
    %c0_i32_0 = arith.constant 0 : i32
    %c0_i32_1 = arith.constant 0 : i32
    return %c0_i32, %c0_i32_0 : i32, i32
  }
  func.func @transform_7(%arg0: i32) -> (i32, i32) {
    %c0_i32 = arith.constant 0 : i32
    %c0_i32_0 = arith.constant 0 : i32
    %c0_i32_1 = arith.constant 0 : i32
    return %c0_i32, %c0_i32_0 : i32, i32
  }
  func.func @transform_8(%arg0: i32) -> (i32, i32) {
    %c0_i32 = arith.constant 0 : i32
    %c0_i32_0 = arith.constant 0 : i32
    %c0_i32_1 = arith.constant 0 : i32
    return %c0_i32, %c0_i32_0 : i32, i32
  }
  func.func @transform_9(%arg0: i32) -> (i32, i32) {
    %c0_i32 = arith.constant 0 : i32
    %c0_i32_0 = arith.constant 0 : i32
    return %arg0, %c0_i32 : i32, i32
  }
}

</mosaic_0001>

<llo_original>
// kernel: _mlp_forward_prepared.1
$region0: #{_mlp_forward_prepared.1}
  #allocation0 [shape = 'u32[]', space=smem, size = 0x4, offset = 0x4, fixed_abs, tag = 'smem constant byte address 0x4 - core index']
  #allocation1 [shape = 'u32[144,128]{1,0:T(1,128)}', space=vmem, size = 0x12000, scoped, tag = 'internal scratch']
  %s0 = inlined_call_operand.vmem [shape: f32[256,16], index: 0, kind: input, shape index: {}]
  %s1 = inlined_call_operand.vmem [shape: bf16[16,32], index: 1, kind: input, shape index: {}]
  %s2 = inlined_call_operand.vmem [shape: f32[1,32], index: 2, kind: input, shape index: {}]
  %s3 = inlined_call_operand.vmem [shape: bf16[32,32], index: 3, kind: input, shape index: {}]
  %s4 = inlined_call_operand.vmem [shape: f32[1,32], index: 4, kind: input, shape index: {}]
  %s5 = inlined_call_operand.vmem [shape: bf16[32,32], index: 5, kind: input, shape index: {}]
  %s6 = inlined_call_operand.vmem [shape: f32[1,32], index: 6, kind: input, shape index: {}]
  %s7 = inlined_call_operand.vmem [shape: bf16[32,4], index: 7, kind: input, shape index: {}]
  %s8 = inlined_call_operand.vmem [shape: f32[1,4], index: 8, kind: input, shape index: {}]
  %s9 = inlined_call_operand.vmem [shape: f32[256,4], index: 9, kind: output, shape index: {}]
  %s10 = sld [smem:[#allocation0]]
  $region69: #{_mlp_forward_prepared.1} parent=0
    _
  %s12 = ssub.s32 1, %s10
  %s13 = scalar_select 0, %s12, %s10
  loop: start=0, step=1, limit=4
  $region2: #{_mlp_forward_prepared.1} parent=0 // loop_pre_header
    _
  $region3: #{_mlp_forward_prepared.1} parent=0 // loop_header
    %s15 = sphi 0, %s19
    %p16 = scmp.ge.s32.totalorder %s15, 4
    %s25 = sphi 0, %s27
    %s28 = sphi 0, %s25
    %s29 = sphi 0, %s28
    %s45 = sphi 0, %s29
    %s49 = sphi 0, %s49
    %s51 = sphi 0, %s49
    %s52 = sphi 0, %s51
    %s66 = sphi 0, %s52
    %s70 = sphi 0, %s70
    %s72 = sphi 0, %s70
    %s73 = sphi 0, %s72
    %s87 = sphi 0, %s73
    %s91 = sphi 0, %s91
    %s93 = sphi 0, %s91
    %s94 = sphi 0, %s93
    %s108 = sphi 0, %s94
    %s112 = sphi 0, %s112
    %s114 = sphi 0, %s112
    %s115 = sphi 0, %s114
    %s129 = sphi 0, %s115
    %s133 = sphi 0, %s133
    %s135 = sphi 0, %s133
    %s136 = sphi 0, %s135
    %s150 = sphi 0, %s136
    %s154 = sphi 0, %s154
    %s156 = sphi 0, %s154
    %s157 = sphi 0, %s156
    %s171 = sphi 0, %s157
    %s175 = sphi 0, %s175
    %s177 = sphi 0, %s175
    %s178 = sphi 0, %s177
    %s192 = sphi 0, %s178
    %s196 = sphi 0, %s196
    %s198 = sphi 0, %s196
    %s199 = sphi 0, %s198
    %s213 = sphi 0, %s199
    %s219 = sphi 0, %s221
    %s222 = sphi 0, %s219
    %s223 = sphi 0, %s222
    %s239 = sphi 0, %s223
  $region4: #{_mlp_forward_prepared.1} parent=0 // loop_header_branch
    %18 = sbr.rel (%p16) target = $region8
  $region5: #{_mlp_forward_prepared.1} parent=0 // loop_body
    %s20 = ssub.s32 %s15, 1
    %s21 = ssub.s32 %s15, 2
    %s22 = sadd.s32 %s15, 1
    %s23 = ssub.s32 %s15, %s22
    %p24 = scmp.eq.s32.totalorder %s23, 0
    %s26 = sadd.s32 %s25, 1
    %s27 = scalar_select %p24, %s25, %s26
    %p30 = pneg %p24
    %p31 = scmp.eq.s32.totalorder %s15, 1
    %p32 = por %p30, %p31
    %p33 = scmp.ne.s32.totalorder %s25, %s28
    %p34 = scmp.eq.s32.totalorder %s15, 0
    %p35 = por %p33, %p34
    %p36 = scmp.ne.s32.totalorder %s25, %s28
    %p37 = scmp.eq.s32.totalorder %s20, 1
    %p38 = por %p36, %p37
    %p39 = scmp.ne.s32.totalorder %s28, %s29
    %p40 = scmp.eq.s32.totalorder %s20, 0
    %p41 = por %p39, %p40
    %p42 = scmp.ne.s32.totalorder %s28, %s29
    %p43 = scmp.eq.s32.totalorder %s21, 1
    %p44 = por %p42, %p43
    %p46 = scmp.ne.s32.totalorder %s29, %s45
    %p47 = scmp.eq.s32.totalorder %s21, 0
    %p48 = por %p46, %p47
    %s50 = sadd.s32 %s49, 1
    %p53 = scmp.eq.s32.totalorder %s15, 1
    %p54 = scmp.ne.s32.totalorder %s49, %s51
    %p55 = scmp.eq.s32.totalorder %s15, 0
    %p56 = por %p54, %p55
    %p57 = scmp.ne.s32.totalorder %s49, %s51
    %p58 = scmp.eq.s32.totalorder %s20, 1
    %p59 = por %p57, %p58
    %p60 = scmp.ne.s32.totalorder %s51, %s52
    %p61 = scmp.eq.s32.totalorder %s20, 0
    %p62 = por %p60, %p61
    %p63 = scmp.ne.s32.totalorder %s51, %s52
    %p64 = scmp.eq.s32.totalorder %s21, 1
    %p65 = por %p63, %p64
    %p67 = scmp.ne.s32.totalorder %s52, %s66
    %p68 = scmp.eq.s32.totalorder %s21, 0
    %p69 = por %p67, %p68
    %s71 = sadd.s32 %s70, 1
    %p74 = scmp.eq.s32.totalorder %s15, 1
    %p75 = scmp.ne.s32.totalorder %s70, %s72
    %p76 = scmp.eq.s32.totalorder %s15, 0
    %p77 = por %p75, %p76
    %p78 = scmp.ne.s32.totalorder %s70, %s72
    %p79 = scmp.eq.s32.totalorder %s20, 1
    %p80 = por %p78, %p79
    %p81 = scmp.ne.s32.totalorder %s72, %s73
    %p82 = scmp.eq.s32.totalorder %s20, 0
    %p83 = por %p81, %p82
    %p84 = scmp.ne.s32.totalorder %s72, %s73
    %p85 = scmp.eq.s32.totalorder %s21, 1
    %p86 = por %p84, %p85
    %p88 = scmp.ne.s32.totalorder %s73, %s87
    %p89 = scmp.eq.s32.totalorder %s21, 0
    %p90 = por %p88, %p89
    %s92 = sadd.s32 %s91, 1
    %p95 = scmp.eq.s32.totalorder %s15, 1
    %p96 = scmp.ne.s32.totalorder %s91, %s93
    %p97 = scmp.eq.s32.totalorder %s15, 0
    %p98 = por %p96, %p97
    %p99 = scmp.ne.s32.totalorder %s91, %s93
    %p100 = scmp.eq.s32.totalorder %s20, 1
    %p101 = por %p99, %p100
    %p102 = scmp.ne.s32.totalorder %s93, %s94
    %p103 = scmp.eq.s32.totalorder %s20, 0
    %p104 = por %p102, %p103
    %p105 = scmp.ne.s32.totalorder %s93, %s94
    %p106 = scmp.eq.s32.totalorder %s21, 1
    %p107 = por %p105, %p106
    %p109 = scmp.ne.s32.totalorder %s94, %s108
    %p110 = scmp.eq.s32.totalorder %s21, 0
    %p111 = por %p109, %p110
    %s113 = sadd.s32 %s112, 1
    %p116 = scmp.eq.s32.totalorder %s15, 1
    %p117 = scmp.ne.s32.totalorder %s112, %s114
    %p118 = scmp.eq.s32.totalorder %s15, 0
    %p119 = por %p117, %p118
    %p120 = scmp.ne.s32.totalorder %s112, %s114
    %p121 = scmp.eq.s32.totalorder %s20, 1
    %p122 = por %p120, %p121
    %p123 = scmp.ne.s32.totalorder %s114, %s115
    %p124 = scmp.eq.s32.totalorder %s20, 0
    %p125 = por %p123, %p124
    %p126 = scmp.ne.s32.totalorder %s114, %s115
    %p127 = scmp.eq.s32.totalorder %s21, 1
    %p128 = por %p126, %p127
    %p130 = scmp.ne.s32.totalorder %s115, %s129
    %p131 = scmp.eq.s32.totalorder %s21, 0
    %p132 = por %p130, %p131
    %s134 = sadd.s32 %s133, 1
    %p137 = scmp.eq.s32.totalorder %s15, 1
    %p138 = scmp.ne.s32.totalorder %s133, %s135
    %p139 = scmp.eq.s32.totalorder %s15, 0
    %p140 = por %p138, %p139
    %p141 = scmp.ne.s32.totalorder %s133, %s135
    %p142 = scmp.eq.s32.totalorder %s20, 1
    %p143 = por %p141, %p142
    %p144 = scmp.ne.s32.totalorder %s135, %s136
    %p145 = scmp.eq.s32.totalorder %s20, 0
    %p146 = por %p144, %p145
    %p147 = scmp.ne.s32.totalorder %s135, %s136
    %p148 = scmp.eq.s32.totalorder %s21, 1
    %p149 = por %p147, %p148
    %p151 = scmp.ne.s32.totalorder %s136, %s150
    %p152 = scmp.eq.s32.totalorder %s21, 0
    %p153 = por %p151, %p152
    %s155 = sadd.s32 %s154, 1
    %p158 = scmp.eq.s32.totalorder %s15, 1
    %p159 = scmp.ne.s32.totalorder %s154, %s156
    %p160 = scmp.eq.s32.totalorder %s15, 0
    %p161 = por %p159, %p160
    %p162 = scmp.ne.s32.totalorder %s154, %s156
    %p163 = scmp.eq.s32.totalorder %s20, 1
    %p164 = por %p162, %p163
    %p165 = scmp.ne.s32.totalorder %s156, %s157
    %p166 = scmp.eq.s32.totalorder %s20, 0
    %p167 = por %p165, %p166
    %p168 = scmp.ne.s32.totalorder %s156, %s157
    %p169 = scmp.eq.s32.totalorder %s21, 1
    %p170 = por %p168, %p169
    %p172 = scmp.ne.s32.totalorder %s157, %s171
    %p173 = scmp.eq.s32.totalorder %s21, 0
    %p174 = por %p172, %p173
    %s176 = sadd.s32 %s175, 1
    %p179 = scmp.eq.s32.totalorder %s15, 1
    %p180 = scmp.ne.s32.totalorder %s175, %s177
    %p181 = scmp.eq.s32.totalorder %s15, 0
    %p182 = por %p180, %p181
    %p183 = scmp.ne.s32.totalorder %s175, %s177
    %p184 = scmp.eq.s32.totalorder %s20, 1
    %p185 = por %p183, %p184
    %p186 = scmp.ne.s32.totalorder %s177, %s178
    %p187 = scmp.eq.s32.totalorder %s20, 0
    %p188 = por %p186, %p187
    %p189 = scmp.ne.s32.totalorder %s177, %s178
    %p190 = scmp.eq.s32.totalorder %s21, 1
    %p191 = por %p189, %p190
    %p193 = scmp.ne.s32.totalorder %s178, %s192
    %p194 = scmp.eq.s32.totalorder %s21, 0
    %p195 = por %p193, %p194
    %s197 = sadd.s32 %s196, 1
    %p200 = scmp.eq.s32.totalorder %s15, 1
    %p201 = scmp.ne.s32.totalorder %s196, %s198
    %p202 = scmp.eq.s32.totalorder %s15, 0
    %p203 = por %p201, %p202
    %p204 = scmp.ne.s32.totalorder %s196, %s198
    %p205 = scmp.eq.s32.totalorder %s20, 1
    %p206 = por %p204, %p205
    %p207 = scmp.ne.s32.totalorder %s198, %s199
    %p208 = scmp.eq.s32.totalorder %s20, 0
    %p209 = por %p207, %p208
    %p210 = scmp.ne.s32.totalorder %s198, %s199
    %p211 = scmp.eq.s32.totalorder %s21, 1
    %p212 = por %p210, %p211
    %p214 = scmp.ne.s32.totalorder %s199, %s213
    %p215 = scmp.eq.s32.totalorder %s21, 0
    %p216 = por %p214, %p215
    %s217 = ssub.s32 %s15, %s22
    %p218 = scmp.eq.s32.totalorder %s217, 0
    %s220 = sadd.s32 %s219, 1
    %s221 = scalar_select %p218, %s219, %s220
    %p224 = pneg %p218
    %p225 = scmp.eq.s32.totalorder %s15, 1
    %p226 = por %p224, %p225
    %p227 = scmp.ne.s32.totalorder %s219, %s222
    %p228 = scmp.eq.s32.totalorder %s15, 0
    %p229 = por %p227, %p228
    %p230 = scmp.ne.s32.totalorder %s219, %s222
    %p231 = scmp.eq.s32.totalorder %s20, 1
    %p232 = por %p230, %p231
    %p233 = scmp.ne.s32.totalorder %s222, %s223
    %p234 = scmp.eq.s32.totalorder %s20, 0
    %p235 = por %p233, %p234
    %p236 = scmp.ne.s32.totalorder %s222, %s223
    %p237 = scmp.eq.s32.totalorder %s21, 1
    %p238 = por %p236, %p237
    %p240 = scmp.ne.s32.totalorder %s223, %s239
    %p241 = scmp.eq.s32.totalorder %s21, 0
    %p242 = por %p240, %p241
    %p243 = scmp.le.s32.totalorder 1, %s15
    %p244 = scmp.lt.s32.totalorder %s15, 3
    %p245 = pnand %p243, %p244
    %p246 = pneg %p245
    // Predicated region
    $region9: #{_mlp_forward_prepared.1} parent=5 // pred_check
      _
    $region10: #{_mlp_forward_prepared.1} parent=5 // pred_check_branch
      %248 = sbr.rel (%p245) target = $region12
    $region11: #{_mlp_forward_prepared.1} parent=5 // pred_region
      %s249 = ssub.s32 %s15, 1
      // Predicated region
      $region13: #{_mlp_forward_prepared.1} parent=11 // pred_check
        %p250 = pneg %p62
      $region14: #{_mlp_forward_prepared.1} parent=11 // pred_check_branch
        %252 = sbr.rel (%p250) target = $region16
      $region15: #{_mlp_forward_prepared.1} parent=11 // pred_region
        _
      $region16: #{_mlp_forward_prepared.1} parent=11 // pred_fallthru
        _
      // Predicated region
      $region17: #{_mlp_forward_prepared.1} parent=11 // pred_check
        %p253 = pneg %p83
      $region18: #{_mlp_forward_prepared.1} parent=11 // pred_check_branch
        %255 = sbr.rel (%p253) target = $region20
      $region19: #{_mlp_forward_prepared.1} parent=11 // pred_region
        _
      $region20: #{_mlp_forward_prepared.1} parent=11 // pred_fallthru
        _
      // Predicated region
      $region21: #{_mlp_forward_prepared.1} parent=11 // pred_check
        %p256 = pneg %p104
      $region22: #{_mlp_forward_prepared.1} parent=11 // pred_check_branch
        %258 = sbr.rel (%p256) target = $region24
      $region23: #{_mlp_forward_prepared.1} parent=11 // pred_region
        _
      $region24: #{_mlp_forward_prepared.1} parent=11 // pred_fallthru
        _
      // Predicated region
      $region25: #{_mlp_forward_prepared.1} parent=11 // pred_check
        %p259 = pneg %p125
      $region26: #{_mlp_forward_prepared.1} parent=11 // pred_check_branch
        %261 = sbr.rel (%p259) target = $region28
      $region27: #{_mlp_forward_prepared.1} parent=11 // pred_region
        _
      $region28: #{_mlp_forward_prepared.1} parent=11 // pred_fallthru
        _
      // Predicated region
      $region29: #{_mlp_forward_prepared.1} parent=11 // pred_check
        %p262 = pneg %p146
      $region30: #{_mlp_forward_prepared.1} parent=11 // pred_check_branch
        %264 = sbr.rel (%p262) target = $region32
      $region31: #{_mlp_forward_prepared.1} parent=11 // pred_region
        _
      $region32: #{_mlp_forward_prepared.1} parent=11 // pred_fallthru
        _
      // Predicated region
      $region33: #{_mlp_forward_prepared.1} parent=11 // pred_check
        %p265 = pneg %p167
      $region34: #{_mlp_forward_prepared.1} parent=11 // pred_check_branch
        %267 = sbr.rel (%p265) target = $region36
      $region35: #{_mlp_forward_prepared.1} parent=11 // pred_region
        _
      $region36: #{_mlp_forward_prepared.1} parent=11 // pred_fallthru
        _
      // Predicated region
      $region37: #{_mlp_forward_prepared.1} parent=11 // pred_check
        %p268 = pneg %p188
      $region38: #{_mlp_forward_prepared.1} parent=11 // pred_check_branch
        %270 = sbr.rel (%p268) target = $region40
      $region39: #{_mlp_forward_prepared.1} parent=11 // pred_region
        _
      $region40: #{_mlp_forward_prepared.1} parent=11 // pred_fallthru
        _
      // Predicated region
      $region41: #{_mlp_forward_prepared.1} parent=11 // pred_check
        %p271 = pneg %p209
      $region42: #{_mlp_forward_prepared.1} parent=11 // pred_check_branch
        %273 = sbr.rel (%p271) target = $region44
      $region43: #{_mlp_forward_prepared.1} parent=11 // pred_region
        _
      $region44: #{_mlp_forward_prepared.1} parent=11 // pred_fallthru
        _
    $region12: #{_mlp_forward_prepared.1} parent=5 // pred_fallthru
      _
    %p274 = scmp.lt.s32.totalorder %s15, 2
    // Predicated region
    $region45: #{_mlp_forward_prepared.1} parent=5 // pred_check
      %p275 = pneg %p274
    $region46: #{_mlp_forward_prepared.1} parent=5 // pred_check_branch
      %277 = sbr.rel (%p275) target = $region48
    $region47: #{_mlp_forward_prepared.1} parent=5 // pred_region
      // Predicated region
      $region49: #{_mlp_forward_prepared.1} parent=47 // pred_check
        %p278 = pneg %p35
      $region50: #{_mlp_forward_prepared.1} parent=47 // pred_check_branch
        %280 = sbr.rel (%p278) target = $region52
      $region51: #{_mlp_forward_prepared.1} parent=47 // pred_region
        %s281 = smul.u32 16, %s15
        %p282 = scmp.lt.s32.totalorder %s281, 31
        %s283 = scalar_select %p282, %s281, 31
        %s284 = smul.addr %s283, 8
        %s285 = scalar_lea.vmem %s0, %s284
        %s286 = smul.u32 16, %s15
      $region52: #{_mlp_forward_prepared.1} parent=47 // pred_fallthru
        _
    $region48: #{_mlp_forward_prepared.1} parent=5 // pred_fallthru
      _
    %p287 = scmp.le.s32.totalorder 1, %s15
    %p288 = scmp.lt.s32.totalorder %s15, 3
    %p289 = pnand %p287, %p288
    %p290 = pneg %p289
    // Predicated region
    $region53: #{_mlp_forward_prepared.1} parent=5 // pred_check
      _
    $region54: #{_mlp_forward_prepared.1} parent=5 // pred_check_branch
      %292 = sbr.rel (%p289) target = $region56
    $region55: #{_mlp_forward_prepared.1} parent=5 // pred_region
      %s293 = ssub.s32 %s15, 1
      %s294 = smul.u32 16, %s20
      %p295 = scmp.lt.s32.totalorder %s294, 31
      %s296 = scalar_select %p295, %s294, 31
      %s297 = smul.addr %s296, 8
      %s298 = scalar_lea.vmem %s0, %s297
      %p299 = pneg %p41
      %p300 = pneg %p38
      %p301 = pneg %p62
      %p302 = pneg %p59
      %p303 = pneg %p83
      %p304 = pneg %p80
      %p305 = pneg %p104
      %p306 = pneg %p101
      %p307 = pneg %p125
      %p308 = pneg %p122
      %p309 = pneg %p146
      %p310 = pneg %p143
      %p311 = pneg %p167
      %p312 = pneg %p164
      %p313 = pneg %p188
      %p314 = pneg %p185
      %p315 = pneg %p209
      %p316 = pneg %p206
      %p317 = pneg %p235
      %p318 = pneg %p232
      %s319 = smul.u32 16, %s20
      %p320 = scmp.lt.s32.totalorder %s319, 31
      %s321 = scalar_select %p320, %s319, 31
      %s322 = smul.addr %s321, 8
      %s323 = scalar_lea.vmem %s9, %s322
      %s324 = smul.u32 16, %s20
      %p325 = scmp.lt.s32.totalorder %s324, 31
      %s326 = scalar_select %p325, %s324, 31
      %s327 = smul.addr %s326, 8
      %s328 = scalar_lea.vmem %s0, %s327
      %s329 = smul.u32 16, %s20
      %s330 = smul.u32 16, %s20
      %p331 = scmp.lt.s32.totalorder %s330, 31
      %s332 = scalar_select %p331, %s330, 31
      %s333 = smul.addr %s332, 8
      %s334 = scalar_lea.vmem %s9, %s333
      %s335 = smul.u32 16, %s20
      %v337 = vld [vmem:[%s328] sm:$0xff]
      %v338 = vld [vmem:[%s328 + $0x8] sm:$0xff]
      %v339 = vld [vmem:[%s328 + $0x10] sm:$0xff]
      %v340 = vld [vmem:[%s328 + $0x18] sm:$0xff]
      %v341 = vld [vmem:[%s328 + $0x20] sm:$0xff]
      %v342 = vld [vmem:[%s328 + $0x28] sm:$0xff]
      %v343 = vld [vmem:[%s328 + $0x30] sm:$0xff]
      %v344 = vld [vmem:[%s328 + $0x38] sm:$0xff]
      %v345 = vld [vmem:[%s328 + $0x40] sm:$0xff]
      %v346 = vld [vmem:[%s328 + $0x48] sm:$0xff]
      %v347 = vld [vmem:[%s328 + $0x50] sm:$0xff]
      %v348 = vld [vmem:[%s328 + $0x58] sm:$0xff]
      %v349 = vld [vmem:[%s328 + $0x60] sm:$0xff]
      %v350 = vld [vmem:[%s328 + $0x68] sm:$0xff]
      %v351 = vld [vmem:[%s328 + $0x70] sm:$0xff]
      %v352 = vld [vmem:[%s328 + $0x78] sm:$0xff]
      %v353 = vpack.c.bf16 %v338, %v337
      %v354 = vpack.c.bf16 %v340, %v339
      %v355 = vpack.c.bf16 %v342, %v341
      %v356 = vpack.c.bf16 %v344, %v343
      %v357 = vpack.c.bf16 %v346, %v345
      %v358 = vpack.c.bf16 %v348, %v347
      %v359 = vpack.c.bf16 %v350, %v349
      %v360 = vpack.c.bf16 %v352, %v351
      %v361 = vld [vmem:[%s1] sm:$0xf]
      %v362 = vld [vmem:[%s1 + $0x4] sm:$0xf]
      %v363 = vld [vmem:[%s2] sm:$0x1]
      %v365 = vlaneseq
      %v366 = vshrl.u32 %v365, 7
      %v367 = vsub.s32 0, %v366
      %v368 = vrot.slane %v363, %v367
      %v372 = vunpack.c.l.b16 %v361
      %v373 = vunpack.c.l.b16 %v362
      %v374 = vpack.c.b16 %v373, %v372
      %vm376 = vcmask 130048
      %v378 = vsel %vm376, %v353, 0
      %v381 = vsel %vm376, %v354, 0
      %v384 = vsel %vm376, %v355, 0
      %v387 = vsel %vm376, %v356, 0
      %v390 = vsel %vm376, %v357, 0
      %v393 = vsel %vm376, %v358, 0
      %v396 = vsel %vm376, %v359, 0
      %v399 = vsel %vm376, %v360, 0
      %401 = vmatprep.subr.bf16.mxu0 0
      %402 = vmatpush1.bf16.msra.mxu0 %v374
      %403 = vmatprep.subr.bf16.mxu0 0
      %404 = vmatpush1.bf16.msra.mxu0 0
      %405 = vmatprep.subr.bf16.mxu0 0
      %406 = vmatpush1.bf16.msra.mxu0 0
      %407 = vmatprep.subr.bf16.mxu0 0
      %408 = vmatpush1.bf16.msra.mxu0 0
      %409 = vmatprep.subr.bf16.mxu0 0
      %410 = vmatpush1.bf16.msra.mxu0 0
      %411 = vmatprep.subr.bf16.mxu0 0
      %412 = vmatpush1.bf16.msra.mxu0 0
      %413 = vmatprep.subr.bf16.mxu0 0
      %414 = vmatpush1.bf16.msra.mxu0 0
      %415 = vmatprep.subr.bf16.mxu0 0
      %416 = vmatpush1.bf16.msra.mxu0 0
      %417 = vmatprep.subr.bf16.mxu0 0
      %418 = vmatpush1.bf16.msra.mxu0 0
      %419 = vmatprep.subr.bf16.mxu0 0
      %420 = vmatpush1.bf16.msra.mxu0 0
      %421 = vmatprep.subr.bf16.mxu0 0
      %422 = vmatpush1.bf16.msra.mxu0 0
      %423 = vmatprep.subr.bf16.mxu0 0
      %424 = vmatpush1.bf16.msra.mxu0 0
      %425 = vmatprep.subr.bf16.mxu0 0
      %426 = vmatpush1.bf16.msra.mxu0 0
      %427 = vmatprep.subr.bf16.mxu0 0
      %428 = vmatpush1.bf16.msra.mxu0 0
      %429 = vmatprep.subr.bf16.mxu0 0
      %430 = vmatpush1.bf16.msra.mxu0 0
      %431 = vmatprep.subr.bf16.mxu0 0
      %432 = vmatpush1.bf16.msra.mxu0 0
      %433 = vmatprep.mubr.bf16.mxu0 0
      %434 = vmatmul.mubr.bf16.gmra.mrb[0].mxu0 %v378
      %v435 = vpop.f32.mrb[0].mxu0
      %v436 = vadd.f32 %v368, %v435
      %v437 = vpop.f32.mrb[0].mxu0
      %v438 = vpop.f32.mrb[0].mxu0
      %v439 = vadd.f32 %v368, %v438
      %v440 = vpop.f32.mrb[0].mxu0
      %441 = vmatprep.mubr.bf16.mxu0 0
      %442 = vmatmul.mubr.bf16.gmra.mrb[0].mxu0 %v381
      %v443 = vpop.f32.mrb[0].mxu0
      %v444 = vadd.f32 %v368, %v443
      %v445 = vpop.f32.mrb[0].mxu0
      %v446 = vpop.f32.mrb[0].mxu0
      %v447 = vadd.f32 %v368, %v446
      %v448 = vpop.f32.mrb[0].mxu0
      %449 = vmatprep.mubr.bf16.mxu0 0
      %450 = vmatmul.mubr.bf16.gmra.mrb[0].mxu0 %v384
      %v451 = vpop.f32.mrb[0].mxu0
      %v452 = vadd.f32 %v368, %v451
      %v453 = vpop.f32.mrb[0].mxu0
      %v454 = vpop.f32.mrb[0].mxu0
      %v455 = vadd.f32 %v368, %v454
      %v456 = vpop.f32.mrb[0].mxu0
      %457 = vmatprep.mubr.bf16.mxu0 0
      %458 = vmatmul.mubr.bf16.gmra.mrb[0].mxu0 %v387
      %v459 = vpop.f32.mrb[0].mxu0
      %v460 = vadd.f32 %v368, %v459
      %v461 = vpop.f32.mrb[0].mxu0
      %v462 = vpop.f32.mrb[0].mxu0
      %v463 = vadd.f32 %v368, %v462
      %v464 = vpop.f32.mrb[0].mxu0
      %465 = vmatprep.mubr.bf16.mxu0 0
      %466 = vmatmul.mubr.bf16.gmra.mrb[0].mxu0 %v390
      %v467 = vpop.f32.mrb[0].mxu0
      %v468 = vadd.f32 %v368, %v467
      %v469 = vpop.f32.mrb[0].mxu0
      %v470 = vpop.f32.mrb[0].mxu0
      %v471 = vadd.f32 %v368, %v470
      %v472 = vpop.f32.mrb[0].mxu0
      %473 = vmatprep.mubr.bf16.mxu0 0
      %474 = vmatmul.mubr.bf16.gmra.mrb[0].mxu0 %v393
      %v475 = vpop.f32.mrb[0].mxu0
      %v476 = vadd.f32 %v368, %v475
      %v477 = vpop.f32.mrb[0].mxu0
      %v478 = vpop.f32.mrb[0].mxu0
      %v479 = vadd.f32 %v368, %v478
      %v480 = vpop.f32.mrb[0].mxu0
      %481 = vmatprep.mubr.bf16.mxu0 0
      %482 = vmatmul.mubr.bf16.gmra.mrb[0].mxu0 %v396
      %v483 = vpop.f32.mrb[0].mxu0
      %v484 = vadd.f32 %v368, %v483
      %v485 = vpop.f32.mrb[0].mxu0
      %v486 = vpop.f32.mrb[0].mxu0
      %v487 = vadd.f32 %v368, %v486
      %v488 = vpop.f32.mrb[0].mxu0
      %489 = vmatprep.mubr.bf16.mxu0 0
      %490 = vmatmul.mubr.bf16.gmra.mrb[0].mxu0 %v399
      %v491 = vpop.f32.mrb[0].mxu0
      %v492 = vadd.f32 %v368, %v491
      %v493 = vpop.f32.mrb[0].mxu0
      %v494 = vpop.f32.mrb[0].mxu0
      %v495 = vadd.f32 %v368, %v494
      %v496 = vpop.f32.mrb[0].mxu0
      %497 = vdwg.mxu0
      %v498 = vmax.f32 %v436, 0.0
      %v499 = vmax.f32 %v439, 0.0
      %v500 = vmax.f32 %v444, 0.0
      %v501 = vmax.f32 %v447, 0.0
      %v502 = vmax.f32 %v452, 0.0
      %v503 = vmax.f32 %v455, 0.0
      %v504 = vmax.f32 %v460, 0.0
      %v505 = vmax.f32 %v463, 0.0
      %v506 = vmax.f32 %v468, 0.0
      %v507 = vmax.f32 %v471, 0.0
      %v508 = vmax.f32 %v476, 0.0
      %v509 = vmax.f32 %v479, 0.0
      %v510 = vmax.f32 %v484, 0.0
      %v511 = vmax.f32 %v487, 0.0
      %v512 = vmax.f32 %v492, 0.0
      %v513 = vmax.f32 %v495, 0.0
      %v514 = vpack.c.bf16 %v499, %v498
      %v515 = vpack.c.bf16 %v501, %v500
      %v516 = vpack.c.bf16 %v503, %v502
      %v517 = vpack.c.bf16 %v505, %v504
      %v518 = vpack.c.bf16 %v507, %v506
      %v519 = vpack.c.bf16 %v509, %v508
      %v520 = vpack.c.bf16 %v511, %v510
      %v521 = vpack.c.bf16 %v513, %v512
      %v522 = vld [vmem:[%s3] sm:$0xf]
      %v523 = vld [vmem:[%s3 + $0x4] sm:$0xf]
      %v524 = vld [vmem:[%s3 + $0x8] sm:$0xf]
      %v525 = vld [vmem:[%s3 + $0xc] sm:$0xf]
      %v526 = vld [vmem:[%s4] sm:$0x1]
      %v528 = vlaneseq
      %v529 = vshrl.u32 %v528, 7
      %v530 = vsub.s32 0, %v529
      %v531 = vrot.slane %v526, %v530
      %v537 = vunpack.c.l.b16 %v522
      %v538 = vunpack.c.l.b16 %v523
      %v539 = vunpack.c.l.b16 %v524
      %v540 = vunpack.c.l.b16 %v525
      %v541 = vpack.c.b16 %v538, %v537
      %v542 = vpack.c.b16 %v540, %v539
      %vm545 = vcmask 261120
      %v547 = vsel %vm545, %v514, 0
      %v550 = vsel %vm545, %v515, 0
      %v553 = vsel %vm545, %v516, 0
      %v556 = vsel %vm545, %v517, 0
      %v559 = vsel %vm545, %v518, 0
      %v562 = vsel %vm545, %v519, 0
      %v565 = vsel %vm545, %v520, 0
      %v568 = vsel %vm545, %v521, 0
      %570 = vmatprep.subr.bf16.mxu0 0
      %571 = vmatpush1.bf16.msra.mxu0 %v541
      %572 = vmatprep.subr.bf16.mxu0 0
      %573 = vmatpush1.bf16.msra.mxu0 %v542
      %574 = vmatprep.subr.bf16.mxu0 0
      %575 = vmatpush1.bf16.msra.mxu0 0
      %576 = vmatprep.subr.bf16.mxu0 0
      %577 = vmatpush1.bf16.msra.mxu0 0
      %578 = vmatprep.subr.bf16.mxu0 0
      %579 = vmatpush1.bf16.msra.mxu0 0
      %580 = vmatprep.subr.bf16.mxu0 0
      %581 = vmatpush1.bf16.msra.mxu0 0
      %582 = vmatprep.subr.bf16.mxu0 0
      %583 = vmatpush1.bf16.msra.mxu0 0
      %584 = vmatprep.subr.bf16.mxu0 0
      %585 = vmatpush1.bf16.msra.mxu0 0
      %586 = vmatprep.subr.bf16.mxu0 0
      %587 = vmatpush1.bf16.msra.mxu0 0
      %588 = vmatprep.subr.bf16.mxu0 0
      %589 = vmatpush1.bf16.msra.mxu0 0
      %590 = vmatprep.subr.bf16.mxu0 0
      %591 = vmatpush1.bf16.msra.mxu0 0
      %592 = vmatprep.subr.bf16.mxu0 0
      %593 = vmatpush1.bf16.msra.mxu0 0
      %594 = vmatprep.subr.bf16.mxu0 0
      %595 = vmatpush1.bf16.msra.mxu0 0
      %596 = vmatprep.subr.bf16.mxu0 0
      %597 = vmatpush1.bf16.msra.mxu0 0
      %598 = vmatprep.subr.bf16.mxu0 0
      %599 = vmatpush1.bf16.msra.mxu0 0
      %600 = vmatprep.subr.bf16.mxu0 0
      %601 = vmatpush1.bf16.msra.mxu0 0
      %602 = vmatprep.mubr.bf16.mxu0 0
      %603 = vmatmul.mubr.bf16.gmra.mrb[0].mxu0 %v547
      %v604 = vpop.f32.mrb[0].mxu0
      %v605 = vadd.f32 %v531, %v604
      %v606 = vpop.f32.mrb[0].mxu0
      %v607 = vpop.f32.mrb[0].mxu0
      %v608 = vadd.f32 %v531, %v607
      %v609 = vpop.f32.mrb[0].mxu0
      %610 = vmatprep.mubr.bf16.mxu0 0
      %611 = vmatmul.mubr.bf16.gmra.mrb[0].mxu0 %v550
      %v612 = vpop.f32.mrb[0].mxu0
      %v613 = vadd.f32 %v531, %v612
      %v614 = vpop.f32.mrb[0].mxu0
      %v615 = vpop.f32.mrb[0].mxu0
      %v616 = vadd.f32 %v531, %v615
      %v617 = vpop.f32.mrb[0].mxu0
      %618 = vmatprep.mubr.bf16.mxu0 0
      %619 = vmatmul.mubr.bf16.gmra.mrb[0].mxu0 %v553
      %v620 = vpop.f32.mrb[0].mxu0
      %v621 = vadd.f32 %v531, %v620
      %v622 = vpop.f32.mrb[0].mxu0
      %v623 = vpop.f32.mrb[0].mxu0
      %v624 = vadd.f32 %v531, %v623
      %v625 = vpop.f32.mrb[0].mxu0
      %626 = vmatprep.mubr.bf16.mxu0 0
      %627 = vmatmul.mubr.bf16.gmra.mrb[0].mxu0 %v556
      %v628 = vpop.f32.mrb[0].mxu0
      %v629 = vadd.f32 %v531, %v628
      %v630 = vpop.f32.mrb[0].mxu0
      %v631 = vpop.f32.mrb[0].mxu0
      %v632 = vadd.f32 %v531, %v631
      %v633 = vpop.f32.mrb[0].mxu0
      %634 = vmatprep.mubr.bf16.mxu0 0
      %635 = vmatmul.mubr.bf16.gmra.mrb[0].mxu0 %v559
      %v636 = vpop.f32.mrb[0].mxu0
      %v637 = vadd.f32 %v531, %v636
      %v638 = vpop.f32.mrb[0].mxu0
      %v639 = vpop.f32.mrb[0].mxu0
      %v640 = vadd.f32 %v531, %v639
      %v641 = vpop.f32.mrb[0].mxu0
      %642 = vmatprep.mubr.bf16.mxu0 0
      %643 = vmatmul.mubr.bf16.gmra.mrb[0].mxu0 %v562
      %v644 = vpop.f32.mrb[0].mxu0
      %v645 = vadd.f32 %v531, %v644
      %v646 = vpop.f32.mrb[0].mxu0
      %v647 = vpop.f32.mrb[0].mxu0
      %v648 = vadd.f32 %v531, %v647
      %v649 = vpop.f32.mrb[0].mxu0
      %650 = vmatprep.mubr.bf16.mxu0 0
      %651 = vmatmul.mubr.bf16.gmra.mrb[0].mxu0 %v565
      %v652 = vpop.f32.mrb[0].mxu0
      %v653 = vadd.f32 %v531, %v652
      %v654 = vpop.f32.mrb[0].mxu0
      %v655 = vpop.f32.mrb[0].mxu0
      %v656 = vadd.f32 %v531, %v655
      %v657 = vpop.f32.mrb[0].mxu0
      %658 = vmatprep.mubr.bf16.mxu0 0
      %659 = vmatmul.mubr.bf16.gmra.mrb[0].mxu0 %v568
      %v660 = vpop.f32.mrb[0].mxu0
      %v661 = vadd.f32 %v531, %v660
      %v662 = vpop.f32.mrb[0].mxu0
      %v663 = vpop.f32.mrb[0].mxu0
      %v664 = vadd.f32 %v531, %v663
      %v665 = vpop.f32.mrb[0].mxu0
      %666 = vdwg.mxu0
      %v667 = vmax.f32 %v605, 0.0
      %v668 = vmax.f32 %v608, 0.0
      %v669 = vmax.f32 %v613, 0.0
      %v670 = vmax.f32 %v616, 0.0
      %v671 = vmax.f32 %v621, 0.0
      %v672 = vmax.f32 %v624, 0.0
      %v673 = vmax.f32 %v629, 0.0
      %v674 = vmax.f32 %v632, 0.0
      %v675 = vmax.f32 %v637, 0.0
      %v676 = vmax.f32 %v640, 0.0
      %v677 = vmax.f32 %v645, 0.0
      %v678 = vmax.f32 %v648, 0.0
      %v679 = vmax.f32 %v653, 0.0
      %v680 = vmax.f32 %v656, 0.0
      %v681 = vmax.f32 %v661, 0.0
      %v682 = vmax.f32 %v664, 0.0
      %v683 = vpack.c.bf16 %v668, %v667
      %v684 = vpack.c.bf16 %v670, %v669
      %v685 = vpack.c.bf16 %v672, %v671
      %v686 = vpack.c.bf16 %v674, %v673
      %v687 = vpack.c.bf16 %v676, %v675
      %v688 = vpack.c.bf16 %v678, %v677
      %v689 = vpack.c.bf16 %v680, %v679
      %v690 = vpack.c.bf16 %v682, %v681
      %v691 = vld [vmem:[%s5] sm:$0xf]
      %v692 = vld [vmem:[%s5 + $0x4] sm:$0xf]
      %v693 = vld [vmem:[%s5 + $0x8] sm:$0xf]
      %v694 = vld [vmem:[%s5 + $0xc] sm:$0xf]
      %v695 = vld [vmem:[%s6] sm:$0x1]
      %v697 = vlaneseq
      %v698 = vshrl.u32 %v697, 7
      %v699 = vsub.s32 0, %v698
      %v700 = vrot.slane %v695, %v699
      %v706 = vunpack.c.l.b16 %v691
      %v707 = vunpack.c.l.b16 %v692
      %v708 = vunpack.c.l.b16 %v693
      %v709 = vunpack.c.l.b16 %v694
      %v710 = vpack.c.b16 %v707, %v706
      %v711 = vpack.c.b16 %v709, %v708
      %v715 = vsel %vm545, %v683, 0
      %v718 = vsel %vm545, %v684, 0
      %v721 = vsel %vm545, %v685, 0
      %v724 = vsel %vm545, %v686, 0
      %v727 = vsel %vm545, %v687, 0
      %v730 = vsel %vm545, %v688, 0
      %v733 = vsel %vm545, %v689, 0
      %v736 = vsel %vm545, %v690, 0
      %738 = vmatprep.subr.bf16.mxu0 0
      %739 = vmatpush1.bf16.msra.mxu0 %v710
      %740 = vmatprep.subr.bf16.mxu0 0
      %741 = vmatpush1.bf16.msra.mxu0 %v711
      %742 = vmatprep.subr.bf16.mxu0 0
      %743 = vmatpush1.bf16.msra.mxu0 0
      %744 = vmatprep.subr.bf16.mxu0 0
      %745 = vmatpush1.bf16.msra.mxu0 0
      %746 = vmatprep.subr.bf16.mxu0 0
      %747 = vmatpush1.bf16.msra.mxu0 0
      %748 = vmatprep.subr.bf16.mxu0 0
      %749 = vmatpush1.bf16.msra.mxu0 0
      %750 = vmatprep.subr.bf16.mxu0 0
      %751 = vmatpush1.bf16.msra.mxu0 0
      %752 = vmatprep.subr.bf16.mxu0 0
      %753 = vmatpush1.bf16.msra.mxu0 0
      %754 = vmatprep.subr.bf16.mxu0 0
      %755 = vmatpush1.bf16.msra.mxu0 0
      %756 = vmatprep.subr.bf16.mxu0 0
      %757 = vmatpush1.bf16.msra.mxu0 0
      %758 = vmatprep.subr.bf16.mxu0 0
      %759 = vmatpush1.bf16.msra.mxu0 0
      %760 = vmatprep.subr.bf16.mxu0 0
      %761 = vmatpush1.bf16.msra.mxu0 0
      %762 = vmatprep.subr.bf16.mxu0 0
      %763 = vmatpush1.bf16.msra.mxu0 0
      %764 = vmatprep.subr.bf16.mxu0 0
      %765 = vmatpush1.bf16.msra.mxu0 0
      %766 = vmatprep.subr.bf16.mxu0 0
      %767 = vmatpush1.bf16.msra.mxu0 0
      %768 = vmatprep.subr.bf16.mxu0 0
      %769 = vmatpush1.bf16.msra.mxu0 0
      %770 = vmatprep.mubr.bf16.mxu0 0
      %771 = vmatmul.mubr.bf16.gmra.mrb[0].mxu0 %v715
      %v772 = vpop.f32.mrb[0].mxu0
      %v773 = vadd.f32 %v700, %v772
      %v774 = vpop.f32.mrb[0].mxu0
      %v775 = vpop.f32.mrb[0].mxu0
      %v776 = vadd.f32 %v700, %v775
      %v777 = vpop.f32.mrb[0].mxu0
      %778 = vmatprep.mubr.bf16.mxu0 0
      %779 = vmatmul.mubr.bf16.gmra.mrb[0].mxu0 %v718
      %v780 = vpop.f32.mrb[0].mxu0
      %v781 = vadd.f32 %v700, %v780
      %v782 = vpop.f32.mrb[0].mxu0
      %v783 = vpop.f32.mrb[0].mxu0
      %v784 = vadd.f32 %v700, %v783
      %v785 = vpop.f32.mrb[0].mxu0
      %786 = vmatprep.mubr.bf16.mxu0 0
      %787 = vmatmul.mubr.bf16.gmra.mrb[0].mxu0 %v721
      %v788 = vpop.f32.mrb[0].mxu0
      %v789 = vadd.f32 %v700, %v788
      %v790 = vpop.f32.mrb[0].mxu0
      %v791 = vpop.f32.mrb[0].mxu0
      %v792 = vadd.f32 %v700, %v791
      %v793 = vpop.f32.mrb[0].mxu0
      %794 = vmatprep.mubr.bf16.mxu0 0
      %795 = vmatmul.mubr.bf16.gmra.mrb[0].mxu0 %v724
      %v796 = vpop.f32.mrb[0].mxu0
      %v797 = vadd.f32 %v700, %v796
      %v798 = vpop.f32.mrb[0].mxu0
      %v799 = vpop.f32.mrb[0].mxu0
      %v800 = vadd.f32 %v700, %v799
      %v801 = vpop.f32.mrb[0].mxu0
      %802 = vmatprep.mubr.bf16.mxu0 0
      %803 = vmatmul.mubr.bf16.gmra.mrb[0].mxu0 %v727
      %v804 = vpop.f32.mrb[0].mxu0
      %v805 = vadd.f32 %v700, %v804
      %v806 = vpop.f32.mrb[0].mxu0
      %v807 = vpop.f32.mrb[0].mxu0
      %v808 = vadd.f32 %v700, %v807
      %v809 = vpop.f32.mrb[0].mxu0
      %810 = vmatprep.mubr.bf16.mxu0 0
      %811 = vmatmul.mubr.bf16.gmra.mrb[0].mxu0 %v730
      %v812 = vpop.f32.mrb[0].mxu0
      %v813 = vadd.f32 %v700, %v812
      %v814 = vpop.f32.mrb[0].mxu0
      %v815 = vpop.f32.mrb[0].mxu0
      %v816 = vadd.f32 %v700, %v815
      %v817 = vpop.f32.mrb[0].mxu0
      %818 = vmatprep.mubr.bf16.mxu0 0
      %819 = vmatmul.mubr.bf16.gmra.mrb[0].mxu0 %v733
      %v820 = vpop.f32.mrb[0].mxu0
      %v821 = vadd.f32 %v700, %v820
      %v822 = vpop.f32.mrb[0].mxu0
      %v823 = vpop.f32.mrb[0].mxu0
      %v824 = vadd.f32 %v700, %v823
      %v825 = vpop.f32.mrb[0].mxu0
      %826 = vmatprep.mubr.bf16.mxu0 0
      %827 = vmatmul.mubr.bf16.gmra.mrb[0].mxu0 %v736
      %v828 = vpop.f32.mrb[0].mxu0
      %v829 = vadd.f32 %v700, %v828
      %v830 = vpop.f32.mrb[0].mxu0
      %v831 = vpop.f32.mrb[0].mxu0
      %v832 = vadd.f32 %v700, %v831
      %v833 = vpop.f32.mrb[0].mxu0
      %834 = vdwg.mxu0
      %v835 = vmax.f32 %v773, 0.0
      %v836 = vmax.f32 %v776, 0.0
      %v837 = vmax.f32 %v781, 0.0
      %v838 = vmax.f32 %v784, 0.0
      %v839 = vmax.f32 %v789, 0.0
      %v840 = vmax.f32 %v792, 0.0
      %v841 = vmax.f32 %v797, 0.0
      %v842 = vmax.f32 %v800, 0.0
      %v843 = vmax.f32 %v805, 0.0
      %v844 = vmax.f32 %v808, 0.0
      %v845 = vmax.f32 %v813, 0.0
      %v846 = vmax.f32 %v816, 0.0
      %v847 = vmax.f32 %v821, 0.0
      %v848 = vmax.f32 %v824, 0.0
      %v849 = vmax.f32 %v829, 0.0
      %v850 = vmax.f32 %v832, 0.0
      %v851 = vpack.c.bf16 %v836, %v835
      %v852 = vpack.c.bf16 %v838, %v837
      %v853 = vpack.c.bf16 %v840, %v839
      %v854 = vpack.c.bf16 %v842, %v841
      %v855 = vpack.c.bf16 %v844, %v843
      %v856 = vpack.c.bf16 %v846, %v845
      %v857 = vpack.c.bf16 %v848, %v847
      %v858 = vpack.c.bf16 %v850, %v849
      %v859 = vld [vmem:[%s7] sm:$0xf]
      %v860 = vld [vmem:[%s7 + $0x4] sm:$0xf]
      %v861 = vld [vmem:[%s7 + $0x8] sm:$0xf]
      %v862 = vld [vmem:[%s7 + $0xc] sm:$0xf]
      %v863 = vld [vmem:[%s8] sm:$0x1]
      %v865 = vlaneseq
      %v866 = vshrl.u32 %v865, 7
      %v867 = vsub.s32 0, %v866
      %v868 = vrot.slane %v863, %v867
      %v874 = vunpack.c.l.b16 %v859
      %v875 = vunpack.c.l.b16 %v860
      %v876 = vunpack.c.l.b16 %v861
      %v877 = vunpack.c.l.b16 %v862
      %v878 = vpack.c.b16 %v875, %v874
      %v879 = vpack.c.b16 %v877, %v876
      %v883 = vsel %vm545, %v851, 0
      %v886 = vsel %vm545, %v852, 0
      %v889 = vsel %vm545, %v853, 0
      %v892 = vsel %vm545, %v854, 0
      %v895 = vsel %vm545, %v855, 0
      %v898 = vsel %vm545, %v856, 0
      %v901 = vsel %vm545, %v857, 0
      %v904 = vsel %vm545, %v858, 0
      %906 = vmatprep.subr.bf16.mxu0 0
      %907 = vmatpush1.bf16.msra.mxu0 %v878
      %908 = vmatprep.subr.bf16.mxu0 0
      %909 = vmatpush1.bf16.msra.mxu0 %v879
      %910 = vmatprep.subr.bf16.mxu0 0
      %911 = vmatpush1.bf16.msra.mxu0 0
      %912 = vmatprep.subr.bf16.mxu0 0
      %913 = vmatpush1.bf16.msra.mxu0 0
      %914 = vmatprep.subr.bf16.mxu0 0
      %915 = vmatpush1.bf16.msra.mxu0 0
      %916 = vmatprep.subr.bf16.mxu0 0
      %917 = vmatpush1.bf16.msra.mxu0 0
      %918 = vmatprep.subr.bf16.mxu0 0
      %919 = vmatpush1.bf16.msra.mxu0 0
      %920 = vmatprep.subr.bf16.mxu0 0
      %921 = vmatpush1.bf16.msra.mxu0 0
      %922 = vmatprep.subr.bf16.mxu0 0
      %923 = vmatpush1.bf16.msra.mxu0 0
      %924 = vmatprep.subr.bf16.mxu0 0
      %925 = vmatpush1.bf16.msra.mxu0 0
      %926 = vmatprep.subr.bf16.mxu0 0
      %927 = vmatpush1.bf16.msra.mxu0 0
      %928 = vmatprep.subr.bf16.mxu0 0
      %929 = vmatpush1.bf16.msra.mxu0 0
      %930 = vmatprep.subr.bf16.mxu0 0
      %931 = vmatpush1.bf16.msra.mxu0 0
      %932 = vmatprep.subr.bf16.mxu0 0
      %933 = vmatpush1.bf16.msra.mxu0 0
      %934 = vmatprep.subr.bf16.mxu0 0
      %935 = vmatpush1.bf16.msra.mxu0 0
      %936 = vmatprep.subr.bf16.mxu0 0
      %937 = vmatpush1.bf16.msra.mxu0 0
      %938 = vmatprep.mubr.bf16.mxu0 0
      %939 = vmatmul.mubr.bf16.gmra.mrb[0].mxu0 %v883
      %v940 = vpop.f32.mrb[0].mxu0
      %v941 = vadd.f32 %v868, %v940
      %v942 = vpop.f32.mrb[0].mxu0
      %v943 = vpop.f32.mrb[0].mxu0
      %v944 = vadd.f32 %v868, %v943
      %v945 = vpop.f32.mrb[0].mxu0
      %946 = vmatprep.mubr.bf16.mxu0 0
      %947 = vmatmul.mubr.bf16.gmra.mrb[0].mxu0 %v886
      %v948 = vpop.f32.mrb[0].mxu0
      %v949 = vadd.f32 %v868, %v948
      %v950 = vpop.f32.mrb[0].mxu0
      %v951 = vpop.f32.mrb[0].mxu0
      %v952 = vadd.f32 %v868, %v951
      %v953 = vpop.f32.mrb[0].mxu0
      %954 = vmatprep.mubr.bf16.mxu0 0
      %955 = vmatmul.mubr.bf16.gmra.mrb[0].mxu0 %v889
      %v956 = vpop.f32.mrb[0].mxu0
      %v957 = vadd.f32 %v868, %v956
      %v958 = vpop.f32.mrb[0].mxu0
      %v959 = vpop.f32.mrb[0].mxu0
      %v960 = vadd.f32 %v868, %v959
      %v961 = vpop.f32.mrb[0].mxu0
      %962 = vmatprep.mubr.bf16.mxu0 0
      %963 = vmatmul.mubr.bf16.gmra.mrb[0].mxu0 %v892
      %v964 = vpop.f32.mrb[0].mxu0
      %v965 = vadd.f32 %v868, %v964
      %v966 = vpop.f32.mrb[0].mxu0
      %v967 = vpop.f32.mrb[0].mxu0
      %v968 = vadd.f32 %v868, %v967
      %v969 = vpop.f32.mrb[0].mxu0
      %970 = vmatprep.mubr.bf16.mxu0 0
      %971 = vmatmul.mubr.bf16.gmra.mrb[0].mxu0 %v895
      %v972 = vpop.f32.mrb[0].mxu0
      %v973 = vadd.f32 %v868, %v972
      %v974 = vpop.f32.mrb[0].mxu0
      %v975 = vpop.f32.mrb[0].mxu0
      %v976 = vadd.f32 %v868, %v975
      %v977 = vpop.f32.mrb[0].mxu0
      %978 = vmatprep.mubr.bf16.mxu0 0
      %979 = vmatmul.mubr.bf16.gmra.mrb[0].mxu0 %v898
      %v980 = vpop.f32.mrb[0].mxu0
      %v981 = vadd.f32 %v868, %v980
      %v982 = vpop.f32.mrb[0].mxu0
      %v983 = vpop.f32.mrb[0].mxu0
      %v984 = vadd.f32 %v868, %v983
      %v985 = vpop.f32.mrb[0].mxu0
      %986 = vmatprep.mubr.bf16.mxu0 0
      %987 = vmatmul.mubr.bf16.gmra.mrb[0].mxu0 %v901
      %v988 = vpop.f32.mrb[0].mxu0
      %v989 = vadd.f32 %v868, %v988
      %v990 = vpop.f32.mrb[0].mxu0
      %v991 = vpop.f32.mrb[0].mxu0
      %v992 = vadd.f32 %v868, %v991
      %v993 = vpop.f32.mrb[0].mxu0
      %994 = vmatprep.mubr.bf16.mxu0 0
      %995 = vmatmul.mubr.bf16.gmra.mrb[0].mxu0 %v904
      %v996 = vpop.f32.mrb[0].mxu0
      %v997 = vadd.f32 %v868, %v996
      %v998 = vpop.f32.mrb[0].mxu0
      %v999 = vpop.f32.mrb[0].mxu0
      %v1000 = vadd.f32 %v868, %v999
      %v1001 = vpop.f32.mrb[0].mxu0
      %1002 = vdwg.mxu0
      %vm1003 = vcmask 31744
      %1004 = vst.msk [vmem:[%s334] sm:$0xff] %vm1003, %v941
      %1005 = vst.msk [vmem:[%s334 + $0x8] sm:$0xff] %vm1003, %v944
      %1006 = vst.msk [vmem:[%s334 + $0x10] sm:$0xff] %vm1003, %v949
      %1007 = vst.msk [vmem:[%s334 + $0x18] sm:$0xff] %vm1003, %v952
      %1008 = vst.msk [vmem:[%s334 + $0x20] sm:$0xff] %vm1003, %v957
      %1009 = vst.msk [vmem:[%s334 + $0x28] sm:$0xff] %vm1003, %v960
      %1010 = vst.msk [vmem:[%s334 + $0x30] sm:$0xff] %vm1003, %v965
      %1011 = vst.msk [vmem:[%s334 + $0x38] sm:$0xff] %vm1003, %v968
      %1012 = vst.msk [vmem:[%s334 + $0x40] sm:$0xff] %vm1003, %v973
      %1013 = vst.msk [vmem:[%s334 + $0x48] sm:$0xff] %vm1003, %v976
      %1014 = vst.msk [vmem:[%s334 + $0x50] sm:$0xff] %vm1003, %v981
      %1015 = vst.msk [vmem:[%s334 + $0x58] sm:$0xff] %vm1003, %v984
      %1016 = vst.msk [vmem:[%s334 + $0x60] sm:$0xff] %vm1003, %v989
      %1017 = vst.msk [vmem:[%s334 + $0x68] sm:$0xff] %vm1003, %v992
      %1018 = vst.msk [vmem:[%s334 + $0x70] sm:$0xff] %vm1003, %v997
      %1019 = vst.msk [vmem:[%s334 + $0x78] sm:$0xff] %vm1003, %v1000
      %s1020 = smul.u32 16, %s20
      %p1021 = scmp.lt.s32.totalorder %s1020, 31
      %s1022 = scalar_select %p1021, %s1020, 31
      %s1023 = smul.addr %s1022, 8
      %s1024 = scalar_lea.vmem %s9, %s1023
      // Predicated region
      $region57: #{_mlp_forward_prepared.1} parent=55 // pred_check
        %p1025 = pneg %p232
      $region58: #{_mlp_forward_prepared.1} parent=55 // pred_check_branch
        %1027 = sbr.rel (%p1025) target = $region60
      $region59: #{_mlp_forward_prepared.1} parent=55 // pred_region
        %s1028 = smul.u32 16, %s20
      $region60: #{_mlp_forward_prepared.1} parent=55 // pred_fallthru
        _
    $region56: #{_mlp_forward_prepared.1} parent=5 // pred_fallthru
      _
    %p1029 = scmp.le.s32.totalorder 2, %s15
    // Predicated region
    $region61: #{_mlp_forward_prepared.1} parent=5 // pred_check
      %p1030 = pneg %p1029
    $region62: #{_mlp_forward_prepared.1} parent=5 // pred_check_branch
      %1032 = sbr.rel (%p1030) target = $region64
    $region63: #{_mlp_forward_prepared.1} parent=5 // pred_region
      %s1033 = ssub.s32 %s15, 2
      // Predicated region
      $region65: #{_mlp_forward_prepared.1} parent=63 // pred_check
        %p1034 = pneg %p238
      $region66: #{_mlp_forward_prepared.1} parent=63 // pred_check_branch
        %1036 = sbr.rel (%p1034) target = $region68
      $region67: #{_mlp_forward_prepared.1} parent=63 // pred_region
        %s1037 = smul.u32 16, %s21
        %p1038 = scmp.lt.s32.totalorder %s1037, 31
        %s1039 = scalar_select %p1038, %s1037, 31
        %s1040 = smul.addr %s1039, 8
        %s1041 = scalar_lea.vmem %s9, %s1040
      $region68: #{_mlp_forward_prepared.1} parent=63 // pred_fallthru
        _
    $region64: #{_mlp_forward_prepared.1} parent=5 // pred_fallthru
      _
  $region6: #{_mlp_forward_prepared.1} parent=0 // loop_footer
    %s19 = sadd.s32 1, %s15
  $region7: #{_mlp_forward_prepared.1} parent=0 // loop_footer_branch
    %14 = sbr.rel target = $region3
  $region8: #{_mlp_forward_prepared.1} parent=0 // loop_exit
    _

</llo_original>
